<compile_context>
chip_gen: v7x
topology: tpu7x:2x2x1
jax: 0.10.0
libtpu: 0.0.40
codegen_flags: <defaults>
</compile_context>

<pallas_src>
import functools

import jax
import jax.numpy as jnp
from jax.experimental import pallas as pl
from jax.experimental.pallas import tpu as pltpu

_LANE = 128
_SUBLANE = 8
_TB_CAP = 1024  # rows per grid step (256 was overhead-bound; 1024 amortizes it)


def _round_up(x: int, m: int) -> int:
    return ((x + m - 1) // m) * m


def _pick_batch_tile(batch: int) -> int:
    """Batch tile: multiple of 16 (bf16 sublane packing)."""
    if batch <= _TB_CAP:
        # Small/medium rollouts: whole batch in one tile (step overhead dominates;
        # don't split).
        return _round_up(batch, 2 * _SUBLANE)
    # Large rollouts: cap the tile but keep >= 2 grid steps so the "parallel"
    # batch axis can span both v7x TensorCores (on v5e/v6e the grid is a loop).
    return min(_TB_CAP, _round_up(-(-batch // 2), 2 * _SUBLANE))


# ----------------------------------------------------------------------------- kernel
def _policy_kernel(x_ref, w1_ref, b1_ref, w2_ref, b2_ref, w3_ref, b3_ref, out_ref):
    # One batch tile per grid step; weights stay VMEM-resident across steps
    # (constant index_maps), so only x (f32, 4*S B/row) and out (bf16, 256 B/row)
    # move per step.
    x = x_ref[...].astype(jnp.bfloat16)                        # bf16 [TB, S]
    # Layer 1 contracts K = num_states directly (w1 is un-padded on its K dim);
    # MXU masks the unaligned contraction dim — no lane-padding of x needed.
    h1 = jnp.tanh(jnp.dot(x, w1_ref[...],
                          preferred_element_type=jnp.float32) + b1_ref[...])   # f32 [TB, H]
    h2 = jnp.tanh(jnp.dot(h1.astype(jnp.bfloat16), w2_ref[...],
                          preferred_element_type=jnp.float32) + b2_ref[...])   # f32 [TB, H]
    # logstddev is folded into (w3, b3): cols [A, 2A) of w3 are zero and those bias
    # entries hold logstddev, so one matmul + bias add produces
    # concat(pi_mean, logstddev) as a single contiguous lane-dense bf16 store.
    out = jnp.dot(h2.astype(jnp.bfloat16), w3_ref[...],
                  preferred_element_type=jnp.float32) + b3_ref[...]            # f32 [TB, O]
    out_ref[...] = out.astype(out_ref.dtype)                   # bf16 [TB, O]


# --------------------------------------------------------------------------- parameters
def init_policy_params(key, num_states, action_dim, hdim=100):
    """Deterministic synthetic init mirroring torch.nn.Linear default
    (uniform(-1/sqrt(fan_in), 1/sqrt(fan_in))) and logstddev = -1.
    Weights stored as [in_features, out_features] (transpose of PyTorch layout)."""
    ks = jax.random.split(key, 6)

    def linear(kw, kb, fan_in, fan_out):
        bound = 1.0 / jnp.sqrt(float(fan_in))
        w = jax.random.uniform(kw, (fan_in, fan_out), jnp.float32, -bound, bound)
        b = jax.random.uniform(kb, (1, fan_out), jnp.float32, -bound, bound)
        return w, b

    w1, b1 = linear(ks[0], ks[1], num_states, hdim)
    w2, b2 = linear(ks[2], ks[3], hdim, hdim)
    w3, b3 = linear(ks[4], ks[5], hdim, action_dim)
    logstd = jnp.full((1, action_dim), -1.0, dtype=jnp.float32)
    return {"w1": w1, "b1": b1, "w2": w2, "b2": b2, "w3": w3, "b3": b3,
            "logstddev": logstd}


def pad_policy_params(params, num_states, action_dim, hdim=100):
    """One-time prep: pad the hidden / output feature dims to 128-lane multiples
    (zero padding keeps padded hidden units inert: tanh(0)=0 and padded weight
    rows/cols are zero) and fold logstddev into the output head.  Layer-1's K dim
    (num_states) is left UNPADDED: the kernel contracts K=num_states directly so
    the activations never need lane padding.  Weights -> bf16 (MXU operands),
    biases -> f32 (accumulator dtype; keeps the logstddev fold exact)."""
    assert 2 * action_dim <= _LANE, "folded head assumes 2*action_dim <= 128"
    h_pad = _round_up(hdim, _LANE)
    o_pad = _round_up(2 * action_dim, _LANE)

    def pad2(a, rows, cols):
        out = jnp.zeros((rows, cols), jnp.float32)
        return out.at[: a.shape[0], : a.shape[1]].set(a)

    w1 = pad2(params["w1"], num_states, h_pad).astype(jnp.bfloat16)
    b1 = pad2(params["b1"], 1, h_pad)
    w2 = pad2(params["w2"], h_pad, h_pad).astype(jnp.bfloat16)
    b2 = pad2(params["b2"], 1, h_pad)
    # Head: cols [0, A) = pi_out weights/bias; cols [A, 2A) = zero weights with
    # bias = logstddev (matmul contributes exact zeros there); rest is zero padding.
    w3 = pad2(params["w3"], h_pad, o_pad).astype(jnp.bfloat16)
    b3 = jnp.zeros((1, o_pad), jnp.float32)
    b3 = b3.at[:, :action_dim].set(params["b3"][0])
    b3 = b3.at[:, action_dim:2 * action_dim].set(params["logstddev"][0])
    return {"w1": w1, "b1": b1, "w2": w2, "b2": b2, "w3": w3, "b3": b3}


# ------------------------------------------------------------------------------ wrapper
@functools.partial(jax.jit, static_argnames=("action_dim",))
def policy_network_forward(states, padded, action_dim):
    """states: [B, num_states] f32; padded: output of pad_policy_params.
    Returns [B, 2*action_dim] f32 = concat(pi_mean, logstddev)."""
    w1, b1, w2, b2, w3, b3 = (padded["w1"], padded["b1"], padded["w2"],
                              padded["b2"], padded["w3"], padded["b3"])
    B, S = states.shape
    h_pad = w1.shape[1]
    o_pad = w3.shape[1]

    tb = _pick_batch_tile(B)
    b_pad = _round_up(B, tb)
    # Only batch-dim zero-pad when needed (no lane pad, no dtype cast): tiny pass.
    x = states if b_pad == B else jnp.pad(states, ((0, b_pad - B), (0, 0)))

    batch_spec = lambda shape: pl.BlockSpec(shape, lambda i: (i, 0))
    resident = lambda shape: pl.BlockSpec(shape, lambda i: (0, 0))  # stays in VMEM

    flops = 2 * b_pad * (S * h_pad + h_pad * h_pad + h_pad * o_pad)
    transcendentals = 2 * b_pad * h_pad  # two tanh layers
    bytes_accessed = (x.size * 4                                   # f32 input read
                      + (w1.size + w2.size + w3.size) * 2          # bf16 weights
                      + (b1.size + b2.size + b3.size) * 4          # f32 biases
                      + b_pad * o_pad * 2)                         # bf16 output write

    out = pl.pallas_call(
        _policy_kernel,
        out_shape=jax.ShapeDtypeStruct((b_pad, o_pad), jnp.bfloat16),
        grid=(b_pad // tb,),
        in_specs=[batch_spec((tb, S)),                 # raw f32 states, full last dim
                  resident((S, h_pad)), resident((1, h_pad)),
                  resident((h_pad, h_pad)), resident((1, h_pad)),
                  resident((h_pad, o_pad)), resident((1, o_pad))],
        out_specs=batch_spec((tb, o_pad)),
        compiler_params=pltpu.CompilerParams(dimension_semantics=("parallel",)),
        cost_estimate=pl.CostEstimate(flops=flops,
                                      transcendentals=transcendentals,
                                      bytes_accessed=bytes_accessed),
    )(x, w1, b1, w2, b2, w3, b3)

    # Module contract is [B, 2*A]; the slice/cast touches only B x 2A elements.
    # (Consumers that can take the padded bf16 [B, 128] slab should use `out` directly.)
    return out[:B, : 2 * action_dim].astype(jnp.float32)


# --------------------------------------------------------------------------- references
def _reference_forward_f32(states, p):
    h1 = jnp.tanh(states @ p["w1"] + p["b1"])
    h2 = jnp.tanh(h1 @ p["w2"] + p["b2"])
    pi = h2 @ p["w3"] + p["b3"]
    logstd = jnp.broadcast_to(p["logstddev"], (states.shape[0], p["w3"].shape[1]))
    return jnp.concatenate([pi, logstd], axis=1)


def _reference_forward_bf16(states, p):
    bf16 = jnp.bfloat16
    h1 = jnp.tanh(jnp.dot(states.astype(bf16), p["w1"].astype(bf16),
                          preferred_element_type=jnp.float32) + p["b1"])
    h2 = jnp.tanh(jnp.dot(h1.astype(bf16), p["w2"].astype(bf16),
                          preferred_element_type=jnp.float32) + p["b2"])
    pi = jnp.dot(h2.astype(bf16), p["w3"].astype(bf16),
                 preferred_element_type=jnp.float32) + p["b3"]
    logstd = jnp.broadcast_to(p["logstddev"], (states.shape[0], p["w3"].shape[1]))
    return jnp.concatenate([pi, logstd], axis=1)


if __name__ == "__main__":
    num_states = 24
    action_dim = 6
    batch = 8

    key = jax.random.PRNGKey(0)
    k_params, k_x = jax.random.split(key)
    params = init_policy_params(k_params, num_states, action_dim)
    padded = pad_policy_params(params, num_states, action_dim)
    states = jax.random.normal(k_x, (batch, num_states), dtype=jnp.float32)

    out = policy_network_forward(states, padded, action_dim)
    out = jax.block_until_ready(out)

    assert out.shape == (batch, 2 * action_dim)
    # logstddev half is produced exactly by the folded bias (zero weight columns,
    # and -1.0 is exact in bf16).
    assert jnp.allclose(out[:, action_dim:], -1.0)
    # Match a bf16-matmul reference tightly (output is bf16-stored), and the pure
    # f32 reference loosely.
    ref_bf16 = _reference_forward_bf16(states, params)
    ref_f32 = _reference_forward_f32(states, params)
    assert jnp.allclose(out, ref_bf16, atol=2e-2, rtol=2e-2), \
        float(jnp.max(jnp.abs(out - ref_bf16)))
    assert jnp.allclose(out, ref_f32, atol=5e-2, rtol=5e-2), \
        float(jnp.max(jnp.abs(out - ref_f32)))

    print("KERNEL_OK")
</pallas_src>

<mosaic_0001>
module attributes {stable_mosaic.version = 11 : i64} {
  func.func @_policy_kernel(%arg0: i32, %arg1: memref<16x24xf32, #tpu.memory_space<vmem>>, %arg2: memref<24x128xbf16, #tpu.memory_space<vmem>>, %arg3: memref<1x128xf32, #tpu.memory_space<vmem>>, %arg4: memref<128x128xbf16, #tpu.memory_space<vmem>>, %arg5: memref<1x128xf32, #tpu.memory_space<vmem>>, %arg6: memref<128x128xbf16, #tpu.memory_space<vmem>>, %arg7: memref<1x128xf32, #tpu.memory_space<vmem>>, %arg8: memref<16x128xbf16, #tpu.memory_space<vmem>>) attributes {dimension_semantics = [#tpu.dimension_semantics<parallel>], iteration_bounds = array<i64: 1>, scalar_prefetch = 0 : i64, scratch_operands = 0 : i64, tpu.core_type = #tpu.core_type<tc>, window_params = [{transform_indices = @transform_0, window_bounds = array<i64: 16, 24>}, {pipeline_mode = #tpu.pipeline_mode<synchronous>, transform_indices = @transform_1, window_bounds = array<i64: 24, 128>}, {pipeline_mode = #tpu.pipeline_mode<synchronous>, transform_indices = @transform_2, window_bounds = array<i64: 1, 128>}, {pipeline_mode = #tpu.pipeline_mode<synchronous>, transform_indices = @transform_3, window_bounds = array<i64: 128, 128>}, {pipeline_mode = #tpu.pipeline_mode<synchronous>, transform_indices = @transform_4, window_bounds = array<i64: 1, 128>}, {pipeline_mode = #tpu.pipeline_mode<synchronous>, transform_indices = @transform_5, window_bounds = array<i64: 128, 128>}, {pipeline_mode = #tpu.pipeline_mode<synchronous>, transform_indices = @transform_6, window_bounds = array<i64: 1, 128>}, {transform_indices = @transform_7, window_bounds = array<i64: 16, 128>}]} {
    %c0 = arith.constant 0 : index
    %c0_0 = arith.constant 0 : index
    %0 = vector.load %arg1[%c0, %c0_0] : memref<16x24xf32, #tpu.memory_space<vmem>>, vector<16x24xf32>
    %1 = arith.truncf %0 : vector<16x24xf32> to vector<16x24xbf16>
    %c0_1 = arith.constant 0 : index
    %c0_2 = arith.constant 0 : index
    %2 = vector.load %arg2[%c0_1, %c0_2] : memref<24x128xbf16, #tpu.memory_space<vmem>>, vector<24x128xbf16>
    %cst = arith.constant dense<0.000000e+00> : vector<16x128xf32>
    %3 = tpu.matmul %1, %2, %cst {dimension_numbers = #tpu.dot_dimension_numbers<[1], [0], [0], [1], [0, 0, 1, 1], [], []>} : vector<16x24xbf16>, vector<24x128xbf16>, vector<16x128xf32> -> vector<16x128xf32>
    %c0_3 = arith.constant 0 : index
    %c0_4 = arith.constant 0 : index
    %4 = vector.load %arg3[%c0_3, %c0_4] : memref<1x128xf32, #tpu.memory_space<vmem>>, vector<1x128xf32>
    %5 = vector.broadcast %4 : vector<1x128xf32> to vector<16x128xf32>
    %6 = arith.addf %3, %5 : vector<16x128xf32>
    %7 = math.tanh %6 : vector<16x128xf32>
    %8 = arith.truncf %7 : vector<16x128xf32> to vector<16x128xbf16>
    %c0_5 = arith.constant 0 : index
    %c0_6 = arith.constant 0 : index
    %9 = vector.load %arg4[%c0_5, %c0_6] : memref<128x128xbf16, #tpu.memory_space<vmem>>, vector<128x128xbf16>
    %cst_7 = arith.constant dense<0.000000e+00> : vector<16x128xf32>
    %10 = tpu.matmul %8, %9, %cst_7 {dimension_numbers = #tpu.dot_dimension_numbers<[1], [0], [0], [1], [0, 0, 1, 1], [], []>} : vector<16x128xbf16>, vector<128x128xbf16>, vector<16x128xf32> -> vector<16x128xf32>
    %c0_8 = arith.constant 0 : index
    %c0_9 = arith.constant 0 : index
    %11 = vector.load %arg5[%c0_8, %c0_9] : memref<1x128xf32, #tpu.memory_space<vmem>>, vector<1x128xf32>
    %12 = vector.broadcast %11 : vector<1x128xf32> to vector<16x128xf32>
    %13 = arith.addf %10, %12 : vector<16x128xf32>
    %14 = math.tanh %13 : vector<16x128xf32>
    %15 = arith.truncf %14 : vector<16x128xf32> to vector<16x128xbf16>
    %c0_10 = arith.constant 0 : index
    %c0_11 = arith.constant 0 : index
    %16 = vector.load %arg6[%c0_10, %c0_11] : memref<128x128xbf16, #tpu.memory_space<vmem>>, vector<128x128xbf16>
    %cst_12 = arith.constant dense<0.000000e+00> : vector<16x128xf32>
    %17 = tpu.matmul %15, %16, %cst_12 {dimension_numbers = #tpu.dot_dimension_numbers<[1], [0], [0], [1], [0, 0, 1, 1], [], []>} : vector<16x128xbf16>, vector<128x128xbf16>, vector<16x128xf32> -> vector<16x128xf32>
    %c0_13 = arith.constant 0 : index
    %c0_14 = arith.constant 0 : index
    %18 = vector.load %arg7[%c0_13, %c0_14] : memref<1x128xf32, #tpu.memory_space<vmem>>, vector<1x128xf32>
    %19 = vector.broadcast %18 : vector<1x128xf32> to vector<16x128xf32>
    %20 = arith.addf %17, %19 : vector<16x128xf32>
    %21 = arith.truncf %20 : vector<16x128xf32> to vector<16x128xbf16>
    %c0_15 = arith.constant 0 : index
    %c0_16 = arith.constant 0 : index
    %22 = vector.load %arg8[%c0_15, %c0_16] : memref<16x128xbf16, #tpu.memory_space<vmem>>, vector<16x128xbf16>
    tpu.vector_store %arg8[%c0_15, %c0_16], %21 {strides = array<i32>} : memref<16x128xbf16, #tpu.memory_space<vmem>>, vector<16x128xbf16>,
    return
  }
  func.func @transform_0(%arg0: i32) -> (i32, i32) {
    %c0_i32 = arith.constant 0 : i32
    %c0_i32_0 = arith.constant 0 : i32
    return %arg0, %c0_i32 : i32, i32
  }
  func.func @transform_1(%arg0: i32) -> (i32, i32) {
    %c0_i32 = arith.constant 0 : i32
    %c0_i32_0 = arith.constant 0 : i32
    %c0_i32_1 = arith.constant 0 : i32
    return %c0_i32, %c0_i32_0 : i32, i32
  }
  func.func @transform_2(%arg0: i32) -> (i32, i32) {
    %c0_i32 = arith.constant 0 : i32
    %c0_i32_0 = arith.constant 0 : i32
    %c0_i32_1 = arith.constant 0 : i32
    return %c0_i32, %c0_i32_0 : i32, i32
  }
  func.func @transform_3(%arg0: i32) -> (i32, i32) {
    %c0_i32 = arith.constant 0 : i32
    %c0_i32_0 = arith.constant 0 : i32
    %c0_i32_1 = arith.constant 0 : i32
    return %c0_i32, %c0_i32_0 : i32, i32
  }
  func.func @transform_4(%arg0: i32) -> (i32, i32) {
    %c0_i32 = arith.constant 0 : i32
    %c0_i32_0 = arith.constant 0 : i32
    %c0_i32_1 = arith.constant 0 : i32
    return %c0_i32, %c0_i32_0 : i32, i32
  }
  func.func @transform_5(%arg0: i32) -> (i32, i32) {
    %c0_i32 = arith.constant 0 : i32
    %c0_i32_0 = arith.constant 0 : i32
    %c0_i32_1 = arith.constant 0 : i32
    return %c0_i32, %c0_i32_0 : i32, i32
  }
  func.func @transform_6(%arg0: i32) -> (i32, i32) {
    %c0_i32 = arith.constant 0 : i32
    %c0_i32_0 = arith.constant 0 : i32
    %c0_i32_1 = arith.constant 0 : i32
    return %c0_i32, %c0_i32_0 : i32, i32
  }
  func.func @transform_7(%arg0: i32) -> (i32, i32) {
    %c0_i32 = arith.constant 0 : i32
    %c0_i32_0 = arith.constant 0 : i32
    return %arg0, %c0_i32 : i32, i32
  }
}

</mosaic_0001>

<llo_original>
// kernel: policy_network_forward.1
$region0: #{policy_network_forward.1}
  #allocation0 [shape = 'u32[]', space=smem, size = 0x4, offset = 0x4, fixed_abs, tag = 'smem constant byte address 0x4 - core index']
  #allocation1 [shape = 'u32[144,128]{1,0:T(1,128)}', space=vmem, size = 0x12000, scoped, tag = 'internal scratch']
  %s0 = inlined_call_operand.vmem [shape: f32[16,24], index: 0, kind: input, shape index: {}]
  %s1 = inlined_call_operand.vmem [shape: bf16[24,128], index: 1, kind: input, shape index: {}]
  %s2 = inlined_call_operand.vmem [shape: f32[1,128], index: 2, kind: input, shape index: {}]
  %s3 = inlined_call_operand.hbm [shape: bf16[128,128], index: 3, kind: input, shape index: {}]
  %s4 = inlined_call_operand.vmem [shape: f32[1,128], index: 4, kind: input, shape index: {}]
  %s5 = inlined_call_operand.hbm [shape: bf16[128,128], index: 5, kind: input, shape index: {}]
  %s6 = inlined_call_operand.vmem [shape: f32[1,128], index: 6, kind: input, shape index: {}]
  %s7 = inlined_call_operand.vmem [shape: bf16[16,128], index: 7, kind: output, shape index: {}]
  %s8 = sld [smem:[#allocation0]]
  $region46: #{policy_network_forward.1} parent=0
    _
  %s10 = ssub.s32 1, %s8
  %s11 = scalar_select 0, %s10, %s8
  $region1: #{policy_network_forward.1} parent=0
    #allocation2 [shape = 'u8[32768]{0}', space=vmem, size = 0x8000, scoped, tag = 'input window, operand 3, single buffered']
    #allocation3 [shape = 's32[1]{0}', space=sflag, size = 0x4, scoped, tag = 'scoped memory for policy_network_forward.1']
    #allocation4 [shape = 'u8[32768]{0}', space=vmem, size = 0x8000, scoped, tag = 'input window, operand 5, single buffered']
    #allocation5 [shape = 's32[1]{0}', space=sflag, size = 0x4, scoped, tag = 'scoped memory for policy_network_forward.1']
    %12 = vsyncpa [#allocation3], 0
    %13 = vsyncpa [#allocation5], 0
    // Predicated region
    $region2: #{policy_network_forward.1} parent=1 // pred_check
      _
    $region3: #{policy_network_forward.1} parent=1 // pred_check_branch
      %15 = sbr.rel (0) target = $region5
    $region4: #{policy_network_forward.1} parent=1 // pred_region
      _
    $region5: #{policy_network_forward.1} parent=1 // pred_fallthru
      _
    // Predicated region
    $region6: #{policy_network_forward.1} parent=1 // pred_check
      _
    $region7: #{policy_network_forward.1} parent=1 // pred_check_branch
      %17 = sbr.rel (0) target = $region9
    $region8: #{policy_network_forward.1} parent=1 // pred_region
      _
    $region9: #{policy_network_forward.1} parent=1 // pred_fallthru
      _
    // Predicated region
    $region10: #{policy_network_forward.1} parent=1 // pred_check
      _
    $region11: #{policy_network_forward.1} parent=1 // pred_check_branch
      %19 = sbr.rel (0) target = $region13
    $region12: #{policy_network_forward.1} parent=1 // pred_region
      _
    $region13: #{policy_network_forward.1} parent=1 // pred_fallthru
      _
    // Predicated region
    $region14: #{policy_network_forward.1} parent=1 // pred_check
      _
    $region15: #{policy_network_forward.1} parent=1 // pred_check_branch
      %21 = sbr.rel (0) target = $region17
    $region16: #{policy_network_forward.1} parent=1 // pred_region
      %s23 = ssub.s32 1024, 1024
      %24 = vsyncadd [#allocation3], %s23
      %s25 = sshll.u32 [#allocation2], 4
      %s26 = int_to_ptr.vmem [resolvable:$true] %s25
      %31 = dma.hbm_to_vmem [thread:$0]  %s3, 1024, %s26, [#allocation3], 64, 64, 4
    $region17: #{policy_network_forward.1} parent=1 // pred_fallthru
      _
    // Predicated region
    $region18: #{policy_network_forward.1} parent=1 // pred_check
      _
    $region19: #{policy_network_forward.1} parent=1 // pred_check_branch
      %33 = sbr.rel (0) target = $region21
    $region20: #{policy_network_forward.1} parent=1 // pred_region
      _
    $region21: #{policy_network_forward.1} parent=1 // pred_fallthru
      _
    // Predicated region
    $region22: #{policy_network_forward.1} parent=1 // pred_check
      _
    $region23: #{policy_network_forward.1} parent=1 // pred_check_branch
      %35 = sbr.rel (0) target = $region25
    $region24: #{policy_network_forward.1} parent=1 // pred_region
      %s37 = ssub.s32 1024, 1024
      %38 = vsyncadd [#allocation5], %s37
      %s39 = sshll.u32 [#allocation4], 4
      %s40 = int_to_ptr.vmem [resolvable:$true] %s39
      %45 = dma.hbm_to_vmem [thread:$0]  %s5, 1024, %s40, [#allocation5], 64, 64, 4
    $region25: #{policy_network_forward.1} parent=1 // pred_fallthru
      _
    // Predicated region
    $region26: #{policy_network_forward.1} parent=1 // pred_check
      _
    $region27: #{policy_network_forward.1} parent=1 // pred_check_branch
      %47 = sbr.rel (0) target = $region29
    $region28: #{policy_network_forward.1} parent=1 // pred_region
      _
    $region29: #{policy_network_forward.1} parent=1 // pred_fallthru
      _
    // Predicated region
    $region30: #{policy_network_forward.1} parent=1 // pred_check
      _
    $region31: #{policy_network_forward.1} parent=1 // pred_check_branch
      %49 = sbr.rel (0) target = $region33
    $region32: #{policy_network_forward.1} parent=1 // pred_region
      %50 = dma.done [#allocation3], 1024
    $region33: #{policy_network_forward.1} parent=1 // pred_fallthru
      _
    // Predicated region
    $region34: #{policy_network_forward.1} parent=1 // pred_check
      _
    $region35: #{policy_network_forward.1} parent=1 // pred_check_branch
      %52 = sbr.rel (0) target = $region37
    $region36: #{policy_network_forward.1} parent=1 // pred_region
      %53 = dma.done [#allocation5], 1024
    $region37: #{policy_network_forward.1} parent=1 // pred_fallthru
      _
    %v55 = vld [vmem:[%s0] sm:$0xff]
    %v56 = vld [vmem:[%s0 + $0x8] sm:$0xff]
    %v57 = vpack.c.bf16 %v56, %v55
    %v58 = vld [vmem:[%s1] sm:$0xf]
    %v59 = vld [vmem:[%s1 + $0x4] sm:$0xf]
    %v60 = vld [vmem:[%s1 + $0x8] sm:$0xf]
    %v61 = vld [vmem:[%s2] sm:$0x1]
    %v63 = vlaneseq
    %v64 = vshrl.u32 %v63, 7
    %v65 = vsub.s32 0, %v64
    %v66 = vrot.slane %v61, %v65
    %v71 = vunpack.c.l.b16 %v58
    %v72 = vunpack.c.l.b16 %v59
    %v73 = vunpack.c.l.b16 %v60
    %v74 = vpack.c.b16 %v72, %v71
    %v75 = vpack.c.b16 %v73, %v73
    %vm77 = vcmask 195584
    %v79 = vsel %vm77, %v57, 0
    %vm81 = vcmask 1043456
    %v83 = vsel %vm81, %v75, 0
    %85 = vmatprep.subr.bf16.mxu0 0
    %86 = vmatpush1.bf16.msra.mxu0 %v74
    %87 = vmatprep.subr.bf16.mxu0 0
    %88 = vmatpush1.bf16.msra.mxu0 %v83
    %89 = vmatprep.subr.bf16.mxu0 0
    %90 = vmatpush1.bf16.msra.mxu0 0
    %91 = vmatprep.subr.bf16.mxu0 0
    %92 = vmatpush1.bf16.msra.mxu0 0
    %93 = vmatprep.subr.bf16.mxu0 0
    %94 = vmatpush1.bf16.msra.mxu0 0
    %95 = vmatprep.subr.bf16.mxu0 0
    %96 = vmatpush1.bf16.msra.mxu0 0
    %97 = vmatprep.subr.bf16.mxu0 0
    %98 = vmatpush1.bf16.msra.mxu0 0
    %99 = vmatprep.subr.bf16.mxu0 0
    %100 = vmatpush1.bf16.msra.mxu0 0
    %101 = vmatprep.subr.bf16.mxu0 0
    %102 = vmatpush1.bf16.msra.mxu0 0
    %103 = vmatprep.subr.bf16.mxu0 0
    %104 = vmatpush1.bf16.msra.mxu0 0
    %105 = vmatprep.subr.bf16.mxu0 0
    %106 = vmatpush1.bf16.msra.mxu0 0
    %107 = vmatprep.subr.bf16.mxu0 0
    %108 = vmatpush1.bf16.msra.mxu0 0
    %109 = vmatprep.subr.bf16.mxu0 0
    %110 = vmatpush1.bf16.msra.mxu0 0
    %111 = vmatprep.subr.bf16.mxu0 0
    %112 = vmatpush1.bf16.msra.mxu0 0
    %113 = vmatprep.subr.bf16.mxu0 0
    %114 = vmatpush1.bf16.msra.mxu0 0
    %115 = vmatprep.subr.bf16.mxu0 0
    %116 = vmatpush1.bf16.msra.mxu0 0
    %117 = vmatprep.mubr.bf16.mxu0 0
    %118 = vmatmul.mubr.bf16.gmra.mrb[0].mxu0 %v79
    %v119 = vpop.f32.mrb[0].mxu0
    %v120 = vadd.f32 %v66, %v119
    %v121 = vpop.f32.mrb[0].mxu0
    %v122 = vpop.f32.mrb[0].mxu0
    %v123 = vadd.f32 %v66, %v122
    %v124 = vpop.f32.mrb[0].mxu0
    %125 = vdwg.mxu0
    %v126 = vtanh.pop %v120
    %v127 = vtanh.pop %v123
    %v128 = vpack.c.bf16 %v127, %v126
    %v129 = vld [vmem:[#allocation2] sm:$0xf]
    %v130 = vld [vmem:[#allocation2 + $0x4] sm:$0xf]
    %v131 = vld [vmem:[#allocation2 + $0x8] sm:$0xf]
    %v132 = vld [vmem:[#allocation2 + $0xc] sm:$0xf]
    %v133 = vld [vmem:[#allocation2 + $0x10] sm:$0xf]
    %v134 = vld [vmem:[#allocation2 + $0x14] sm:$0xf]
    %v135 = vld [vmem:[#allocation2 + $0x18] sm:$0xf]
    %v136 = vld [vmem:[#allocation2 + $0x1c] sm:$0xf]
    %v137 = vld [vmem:[#allocation2 + $0x20] sm:$0xf]
    %v138 = vld [vmem:[#allocation2 + $0x24] sm:$0xf]
    %v139 = vld [vmem:[#allocation2 + $0x28] sm:$0xf]
    %v140 = vld [vmem:[#allocation2 + $0x2c] sm:$0xf]
    %v141 = vld [vmem:[#allocation2 + $0x30] sm:$0xf]
    %v142 = vld [vmem:[#allocation2 + $0x34] sm:$0xf]
    %v143 = vld [vmem:[#allocation2 + $0x38] sm:$0xf]
    %v144 = vld [vmem:[#allocation2 + $0x3c] sm:$0xf]
    %v145 = vld [vmem:[%s4] sm:$0x1]
    %v147 = vlaneseq
    %v148 = vshrl.u32 %v147, 7
    %v149 = vsub.s32 0, %v148
    %v150 = vrot.slane %v145, %v149
    %v168 = vunpack.c.l.b16 %v129
    %v169 = vunpack.c.l.b16 %v130
    %v170 = vunpack.c.l.b16 %v131
    %v171 = vunpack.c.l.b16 %v132
    %v172 = vunpack.c.l.b16 %v133
    %v173 = vunpack.c.l.b16 %v134
    %v174 = vunpack.c.l.b16 %v135
    %v175 = vunpack.c.l.b16 %v136
    %v176 = vunpack.c.l.b16 %v137
    %v177 = vunpack.c.l.b16 %v138
    %v178 = vunpack.c.l.b16 %v139
    %v179 = vunpack.c.l.b16 %v140
    %v180 = vunpack.c.l.b16 %v141
    %v181 = vunpack.c.l.b16 %v142
    %v182 = vunpack.c.l.b16 %v143
    %v183 = vunpack.c.l.b16 %v144
    %v184 = vpack.c.b16 %v169, %v168
    %v185 = vpack.c.b16 %v171, %v170
    %v186 = vpack.c.b16 %v173, %v172
    %v187 = vpack.c.b16 %v175, %v174
    %v188 = vpack.c.b16 %v177, %v176
    %v189 = vpack.c.b16 %v179, %v178
    %v190 = vpack.c.b16 %v181, %v180
    %v191 = vpack.c.b16 %v183, %v182
    %200 = vmatprep.subr.bf16.mxu0 0
    %201 = vmatpush1.bf16.msra.mxu0 %v184
    %202 = vmatprep.subr.bf16.mxu0 0
    %203 = vmatpush1.bf16.msra.mxu0 %v185
    %204 = vmatprep.subr.bf16.mxu0 0
    %205 = vmatpush1.bf16.msra.mxu0 %v186
    %206 = vmatprep.subr.bf16.mxu0 0
    %207 = vmatpush1.bf16.msra.mxu0 %v187
    %208 = vmatprep.subr.bf16.mxu0 0
    %209 = vmatpush1.bf16.msra.mxu0 %v188
    %210 = vmatprep.subr.bf16.mxu0 0
    %211 = vmatpush1.bf16.msra.mxu0 %v189
    %212 = vmatprep.subr.bf16.mxu0 0
    %213 = vmatpush1.bf16.msra.mxu0 %v190
    %214 = vmatprep.subr.bf16.mxu0 0
    %215 = vmatpush1.bf16.msra.mxu0 %v191
    %216 = vmatprep.subr.bf16.mxu0 0
    %217 = vmatpush1.bf16.msra.mxu0 0
    %218 = vmatprep.subr.bf16.mxu0 0
    %219 = vmatpush1.bf16.msra.mxu0 0
    %220 = vmatprep.subr.bf16.mxu0 0
    %221 = vmatpush1.bf16.msra.mxu0 0
    %222 = vmatprep.subr.bf16.mxu0 0
    %223 = vmatpush1.bf16.msra.mxu0 0
    %224 = vmatprep.subr.bf16.mxu0 0
    %225 = vmatpush1.bf16.msra.mxu0 0
    %226 = vmatprep.subr.bf16.mxu0 0
    %227 = vmatpush1.bf16.msra.mxu0 0
    %228 = vmatprep.subr.bf16.mxu0 0
    %229 = vmatpush1.bf16.msra.mxu0 0
    %230 = vmatprep.subr.bf16.mxu0 0
    %231 = vmatpush1.bf16.msra.mxu0 0
    %232 = vmatprep.mubr.bf16.mxu0 0
    %233 = vmatmul.mubr.bf16.gmra.mrb[0].mxu0 %v128
    %v234 = vpop.f32.mrb[0].mxu0
    %v235 = vadd.f32 %v150, %v234
    %v236 = vpop.f32.mrb[0].mxu0
    %v237 = vpop.f32.mrb[0].mxu0
    %v238 = vadd.f32 %v150, %v237
    %v239 = vpop.f32.mrb[0].mxu0
    %240 = vdwg.mxu0
    %v241 = vtanh.pop %v235
    %v242 = vtanh.pop %v238
    %v243 = vpack.c.bf16 %v242, %v241
    %v244 = vld [vmem:[#allocation4] sm:$0xf]
    %v245 = vld [vmem:[#allocation4 + $0x4] sm:$0xf]
    %v246 = vld [vmem:[#allocation4 + $0x8] sm:$0xf]
    %v247 = vld [vmem:[#allocation4 + $0xc] sm:$0xf]
    %v248 = vld [vmem:[#allocation4 + $0x10] sm:$0xf]
    %v249 = vld [vmem:[#allocation4 + $0x14] sm:$0xf]
    %v250 = vld [vmem:[#allocation4 + $0x18] sm:$0xf]
    %v251 = vld [vmem:[#allocation4 + $0x1c] sm:$0xf]
    %v252 = vld [vmem:[#allocation4 + $0x20] sm:$0xf]
    %v253 = vld [vmem:[#allocation4 + $0x24] sm:$0xf]
    %v254 = vld [vmem:[#allocation4 + $0x28] sm:$0xf]
    %v255 = vld [vmem:[#allocation4 + $0x2c] sm:$0xf]
    %v256 = vld [vmem:[#allocation4 + $0x30] sm:$0xf]
    %v257 = vld [vmem:[#allocation4 + $0x34] sm:$0xf]
    %v258 = vld [vmem:[#allocation4 + $0x38] sm:$0xf]
    %v259 = vld [vmem:[#allocation4 + $0x3c] sm:$0xf]
    %v260 = vld [vmem:[%s6] sm:$0x1]
    %v262 = vlaneseq
    %v263 = vshrl.u32 %v262, 7
    %v264 = vsub.s32 0, %v263
    %v265 = vrot.slane %v260, %v264
    %v283 = vunpack.c.l.b16 %v244
    %v284 = vunpack.c.l.b16 %v245
    %v285 = vunpack.c.l.b16 %v246
    %v286 = vunpack.c.l.b16 %v247
    %v287 = vunpack.c.l.b16 %v248
    %v288 = vunpack.c.l.b16 %v249
    %v289 = vunpack.c.l.b16 %v250
    %v290 = vunpack.c.l.b16 %v251
    %v291 = vunpack.c.l.b16 %v252
    %v292 = vunpack.c.l.b16 %v253
    %v293 = vunpack.c.l.b16 %v254
    %v294 = vunpack.c.l.b16 %v255
    %v295 = vunpack.c.l.b16 %v256
    %v296 = vunpack.c.l.b16 %v257
    %v297 = vunpack.c.l.b16 %v258
    %v298 = vunpack.c.l.b16 %v259
    %v299 = vpack.c.b16 %v284, %v283
    %v300 = vpack.c.b16 %v286, %v285
    %v301 = vpack.c.b16 %v288, %v287
    %v302 = vpack.c.b16 %v290, %v289
    %v303 = vpack.c.b16 %v292, %v291
    %v304 = vpack.c.b16 %v294, %v293
    %v305 = vpack.c.b16 %v296, %v295
    %v306 = vpack.c.b16 %v298, %v297
    %315 = vmatprep.subr.bf16.mxu0 0
    %316 = vmatpush1.bf16.msra.mxu0 %v299
    %317 = vmatprep.subr.bf16.mxu0 0
    %318 = vmatpush1.bf16.msra.mxu0 %v300
    %319 = vmatprep.subr.bf16.mxu0 0
    %320 = vmatpush1.bf16.msra.mxu0 %v301
    %321 = vmatprep.subr.bf16.mxu0 0
    %322 = vmatpush1.bf16.msra.mxu0 %v302
    %323 = vmatprep.subr.bf16.mxu0 0
    %324 = vmatpush1.bf16.msra.mxu0 %v303
    %325 = vmatprep.subr.bf16.mxu0 0
    %326 = vmatpush1.bf16.msra.mxu0 %v304
    %327 = vmatprep.subr.bf16.mxu0 0
    %328 = vmatpush1.bf16.msra.mxu0 %v305
    %329 = vmatprep.subr.bf16.mxu0 0
    %330 = vmatpush1.bf16.msra.mxu0 %v306
    %331 = vmatprep.subr.bf16.mxu0 0
    %332 = vmatpush1.bf16.msra.mxu0 0
    %333 = vmatprep.subr.bf16.mxu0 0
    %334 = vmatpush1.bf16.msra.mxu0 0
    %335 = vmatprep.subr.bf16.mxu0 0
    %336 = vmatpush1.bf16.msra.mxu0 0
    %337 = vmatprep.subr.bf16.mxu0 0
    %338 = vmatpush1.bf16.msra.mxu0 0
    %339 = vmatprep.subr.bf16.mxu0 0
    %340 = vmatpush1.bf16.msra.mxu0 0
    %341 = vmatprep.subr.bf16.mxu0 0
    %342 = vmatpush1.bf16.msra.mxu0 0
    %343 = vmatprep.subr.bf16.mxu0 0
    %344 = vmatpush1.bf16.msra.mxu0 0
    %345 = vmatprep.subr.bf16.mxu0 0
    %346 = vmatpush1.bf16.msra.mxu0 0
    %347 = vmatprep.mubr.bf16.mxu0 0
    %348 = vmatmul.mubr.bf16.gmra.mrb[0].mxu0 %v243
    %v349 = vpop.f32.mrb[0].mxu0
    %v350 = vadd.f32 %v265, %v349
    %v351 = vpop.f32.mrb[0].mxu0
    %v352 = vpop.f32.mrb[0].mxu0
    %v353 = vadd.f32 %v265, %v352
    %v354 = vpop.f32.mrb[0].mxu0
    %355 = vdwg.mxu0
    %v356 = vpack.c.bf16 %v353, %v350
    %v358 = vunpack.c.l.b16 %v356
    %v359 = vunpack.c.h.b16 %v356
    %v360 = vpack.c.b16 %v358, %v358
    %v361 = vpack.c.b16 %v359, %v359
    %364 = vst [vmem:[%s7] sm:$0xf] %v360
    %365 = vst [vmem:[%s7 + $0x4] sm:$0xf] %v361
    // Predicated region
    $region38: #{policy_network_forward.1} parent=1 // pred_check
      _
    $region39: #{policy_network_forward.1} parent=1 // pred_check_branch
      %367 = sbr.rel (0) target = $region41
    $region40: #{policy_network_forward.1} parent=1 // pred_region
      _
    $region41: #{policy_network_forward.1} parent=1 // pred_fallthru
      _
    // Predicated region
    $region42: #{policy_network_forward.1} parent=1 // pred_check
      _
    $region43: #{policy_network_forward.1} parent=1 // pred_check_branch
      %369 = sbr.rel (0) target = $region45
    $region44: #{policy_network_forward.1} parent=1 // pred_region
      _
    $region45: #{policy_network_forward.1} parent=1 // pred_fallthru
      _
    %370 = vsyncpa [#allocation3], 1
    %371 = vsyncpa [#allocation5], 1

</llo_original>
